<compile_context>
chip_gen: v6e
topology: v6e:2x2x1
jax: 0.10.0
libtpu: 0.0.40
codegen_flags: <defaults>
</compile_context>

<pallas_src>
import functools

import jax
import jax.numpy as jnp
from jax.experimental import pallas as pl
from jax.experimental.pallas import tpu as pltpu

LANE = 128
SUBLANE = 8
H1, H2, H3 = 128, 128, 128      # padded hidden widths (true: 128, 64, 32)
NEG_BIG = -1e30                 # bias for padded class columns (exp -> 0)


def _round_up(n, m):
    return ((n + m - 1) // m) * m


# --------------------------------------------------------------------------
# Kernel
# --------------------------------------------------------------------------
def mlp_kernel(x_ref, w1_ref, b1_ref, w2_ref, b2_ref,
               w3_ref, b3_ref, w4_ref, b4_ref, out_ref):
    # fc1 -> relu (MXU accumulates in f32; epilogue in f32)
    h = jnp.dot(x_ref[...], w1_ref[...], preferred_element_type=jnp.float32)
    h = jnp.maximum(h + b1_ref[...], 0.0)
    # fc2 -> relu (zero-padded columns stay exactly 0 through +0 bias and relu)
    h = jnp.dot(h.astype(w2_ref.dtype), w2_ref[...],
                preferred_element_type=jnp.float32)
    h = jnp.maximum(h + b2_ref[...], 0.0)
    # fc3 -> relu
    h = jnp.dot(h.astype(w3_ref.dtype), w3_ref[...],
                preferred_element_type=jnp.float32)
    h = jnp.maximum(h + b3_ref[...], 0.0)
    # fc4 (logits); pad class columns get bias -1e30 -> excluded from softmax
    logits = jnp.dot(h.astype(w4_ref.dtype), w4_ref[...],
                     preferred_element_type=jnp.float32)
    logits = logits + b4_ref[...]
    # numerically stable row-wise log_softmax (f32)
    m = jnp.max(logits, axis=-1, keepdims=True)
    z = logits - m
    lse = jnp.log(jnp.sum(jnp.exp(z), axis=-1, keepdims=True))
    res = (z - lse).astype(out_ref.dtype)
    # lane-dense mode: out_ref is (TB, 128) -> full store (no-op slice).
    # narrow mode:     out_ref is (TB, C)   -> static slice, masked store.
    out_ref[...] = res[:, :out_ref.shape[-1]]


# --------------------------------------------------------------------------
# Parameter preparation (done ONCE, outside the hot path)
# --------------------------------------------------------------------------
def prepare_params(params, *, use_bf16=False):
    """Pad weights/biases to lane-dense 128-wide hidden/class dims.

    params: w{i} as [in, out] (transposed vs PyTorch nn.Linear), b{i} as [1, out].
    """
    F = params["w1"].shape[0]
    C = params["w4"].shape[1]
    C_pad = _round_up(max(C, LANE), LANE)
    w_dtype = jnp.bfloat16 if use_bf16 else jnp.float32

    def pad_w(w, rows, cols):
        r, c = w.shape
        return jnp.pad(w, ((0, rows - r), (0, cols - c))).astype(w_dtype)

    def pad_b(b, cols, fill=0.0):
        b = jnp.asarray(b, jnp.float32).reshape(1, -1)
        return jnp.pad(b, ((0, 0), (0, cols - b.shape[1])), constant_values=fill)

    pp = {
        "w1": pad_w(params["w1"], F,  H1), "b1": pad_b(params["b1"], H1),
        "w2": pad_w(params["w2"], H1, H2), "b2": pad_b(params["b2"], H2),
        "w3": pad_w(params["w3"], H2, H3), "b3": pad_b(params["b3"], H3),
        "w4": pad_w(params["w4"], H3, C_pad),
        "b4": pad_b(params["b4"], C_pad, fill=NEG_BIG),
        "F": F, "C": C, "C_pad": C_pad, "use_bf16": use_bf16,
    }
    return pp


# --------------------------------------------------------------------------
# Forward (traced under jit; all padding / slicing fuses with the call)
# --------------------------------------------------------------------------
def _forward_impl(x, pp, *, block_b, lane_dense_out):
    B, F = x.shape
    assert F == pp["F"], "feature dim mismatch"
    C, C_pad = pp["C"], pp["C_pad"]
    use_bf16 = pp["use_bf16"]

    # ---- batch tiling: minimal padding, >=2 steps when splittable (v7x) ----
    n_steps = max(pl.cdiv(B, block_b), 1)
    if n_steps == 1 and B >= 2 * SUBLANE:
        n_steps = 2                      # let both v7x TensorCores participate
    TB = _round_up(pl.cdiv(B, n_steps), SUBLANE)
    B_pad = n_steps * TB

    x = x.astype(jnp.bfloat16) if use_bf16 else x.astype(jnp.float32)
    if B_pad != B:
        x = jnp.pad(x, ((0, B_pad - B), (0, 0)))

    C_out = C_pad if lane_dense_out else C
    x_spec = pl.BlockSpec((TB, F), lambda i: (i, 0))
    out_spec = pl.BlockSpec((TB, C_out), lambda i: (i, 0))

    def resident(shape):
        # full-array block, constant index -> DMA'd once, stays in VMEM
        return pl.BlockSpec(shape, lambda i: (0, 0))

    in_specs = [
        x_spec,
        resident((F, H1)),  resident((1, H1)),
        resident((H1, H2)), resident((1, H2)),
        resident((H2, H3)), resident((1, H3)),
        resident((H3, C_pad)), resident((1, C_pad)),
    ]

    # ---- advisory cost estimate for the XLA scheduler ----
    in_bytes = 2 if use_bf16 else 4
    flops = 2 * B_pad * (F * H1 + H1 * H2 + H2 * H3 + H3 * C_pad)
    transcendentals = B_pad * C_pad + B_pad
    param_elems = (F * H1 + H1 * H2 + H2 * H3 + H3 * C_pad
                   + H1 + H2 + H3 + C_pad)
    bytes_accessed = (in_bytes * (B_pad * F + param_elems)
                      + 4 * B_pad * C_out)
    cost = pl.CostEstimate(flops=flops, transcendentals=transcendentals,
                           bytes_accessed=bytes_accessed)

    out_padded = pl.pallas_call(
        mlp_kernel,
        out_shape=jax.ShapeDtypeStruct((B_pad, C_out), jnp.float32),
        grid=(n_steps,),
        in_specs=in_specs,
        out_specs=out_spec,
        compiler_params=pltpu.CompilerParams(
            dimension_semantics=("parallel",),   # megacore sharding on v7x
        ),
        cost_estimate=cost,
    )(x, pp["w1"], pp["b1"], pp["w2"], pp["b2"],
      pp["w3"], pp["b3"], pp["w4"], pp["b4"])

    return out_padded[:B, :C]        # fused with the call under jit


def make_forward(params, *, block_b=4096, use_bf16=False, lane_dense_out=True):
    """Pre-pad parameters once and return a jitted forward: x[B, F] -> [B, C]."""
    pp = prepare_params(params, use_bf16=use_bf16)

    @jax.jit
    def fwd(x):
        return _forward_impl(x, pp, block_b=block_b,
                             lane_dense_out=lane_dense_out)

    return fwd


# --------------------------------------------------------------------------
# Reference / init
# --------------------------------------------------------------------------
def init_params(key, input_shape, n_classes):
    """Deterministic synthetic init (PyTorch-like uniform fan-in scaling).
    Weights stored as [in, out] so the kernel computes x @ W + b."""
    dims = [(input_shape, 128), (128, 64), (64, 32), (32, n_classes)]
    params = {}
    for i, (fan_in, fan_out) in enumerate(dims, start=1):
        key, kw, kb = jax.random.split(key, 3)
        bound = 1.0 / jnp.sqrt(jnp.float32(fan_in))
        params[f"w{i}"] = jax.random.uniform(
            kw, (fan_in, fan_out), jnp.float32, -bound, bound)
        params[f"b{i}"] = jax.random.uniform(
            kb, (1, fan_out), jnp.float32, -bound, bound)
    return params


def reference_forward(x, params):
    h = jnp.maximum(x @ params["w1"] + params["b1"], 0.0)
    h = jnp.maximum(h @ params["w2"] + params["b2"], 0.0)
    h = jnp.maximum(h @ params["w3"] + params["b3"], 0.0)
    logits = h @ params["w4"] + params["b4"]
    return jax.nn.log_softmax(logits, axis=1)


# TODO(synk): training utilities (compile/fit/predict with DataLoader, optimizer,
# CrossEntropyLoss) are host-side training loops with no Pallas equivalent; only
# the forward pass is implemented here.

if __name__ == "__main__":
    key = jax.random.PRNGKey(0)
    B, INPUT_SHAPE, N_CLASSES = 8, 32, 10

    kx, kp, kx2 = jax.random.split(key, 3)
    params = init_params(kp, INPUT_SHAPE, N_CLASSES)

    # --- f32 path, small single-tile batch ---
    fwd = make_forward(params)                       # pad once + jit
    x = jax.random.normal(kx, (B, INPUT_SHAPE), jnp.float32)
    out = jax.block_until_ready(fwd(x))
    ref = reference_forward(x, params)
    assert out.shape == (B, N_CLASSES)
    assert jnp.allclose(out, ref, atol=1e-5, rtol=1e-5), "mismatch vs reference"

    # --- f32 path, ragged batch exercising multi-step grid + row padding ---
    B2 = 200
    fwd_tiled = make_forward(params, block_b=64)
    x2 = jax.random.normal(kx2, (B2, INPUT_SHAPE), jnp.float32)
    out2 = jax.block_until_ready(fwd_tiled(x2))
    ref2 = reference_forward(x2, params)
    assert out2.shape == (B2, N_CLASSES)
    assert jnp.allclose(out2, ref2, atol=1e-5, rtol=1e-5), "mismatch (tiled)"

    # --- narrow-output variant (reduced HBM writeback) ---
    fwd_narrow = make_forward(params, lane_dense_out=False)
    out3 = jax.block_until_ready(fwd_narrow(x2))
    assert out3.shape == (B2, N_CLASSES)
    assert jnp.allclose(out3, ref2, atol=1e-5, rtol=1e-5), "mismatch (narrow out)"

    # --- bf16 matmul inputs, f32 accumulation/epilogue (relaxed tolerance) ---
    fwd_bf16 = make_forward(params, use_bf16=True)
    out4 = jax.block_until_ready(fwd_bf16(x))
    assert out4.shape == (B, N_CLASSES)
    assert jnp.allclose(out4, ref, atol=5e-2, rtol=5e-2), "mismatch (bf16)"

    print("KERNEL_OK")
</pallas_src>

<mosaic_0001>
module attributes {stable_mosaic.version = 11 : i64} {
  func.func @mlp_kernel(%arg0: i32, %arg1: memref<8x32xf32, #tpu.memory_space<vmem>>, %arg2: memref<32x128xf32, #tpu.memory_space<vmem>>, %arg3: memref<1x128xf32, #tpu.memory_space<vmem>>, %arg4: memref<128x128xf32, #tpu.memory_space<vmem>>, %arg5: memref<1x128xf32, #tpu.memory_space<vmem>>, %arg6: memref<128x128xf32, #tpu.memory_space<vmem>>, %arg7: memref<1x128xf32, #tpu.memory_space<vmem>>, %arg8: memref<128x128xf32, #tpu.memory_space<vmem>>, %arg9: memref<1x128xf32, #tpu.memory_space<vmem>>, %arg10: memref<8x128xf32, #tpu.memory_space<vmem>>) attributes {dimension_semantics = [#tpu.dimension_semantics<parallel>], iteration_bounds = array<i64: 1>, scalar_prefetch = 0 : i64, scratch_operands = 0 : i64, tpu.core_type = #tpu.core_type<tc>, window_params = [{transform_indices = @transform_0, window_bounds = array<i64: 8, 32>}, {pipeline_mode = #tpu.pipeline_mode<synchronous>, transform_indices = @transform_1, window_bounds = array<i64: 32, 128>}, {pipeline_mode = #tpu.pipeline_mode<synchronous>, transform_indices = @transform_2, window_bounds = array<i64: 1, 128>}, {pipeline_mode = #tpu.pipeline_mode<synchronous>, transform_indices = @transform_3, window_bounds = array<i64: 128, 128>}, {pipeline_mode = #tpu.pipeline_mode<synchronous>, transform_indices = @transform_4, window_bounds = array<i64: 1, 128>}, {pipeline_mode = #tpu.pipeline_mode<synchronous>, transform_indices = @transform_5, window_bounds = array<i64: 128, 128>}, {pipeline_mode = #tpu.pipeline_mode<synchronous>, transform_indices = @transform_6, window_bounds = array<i64: 1, 128>}, {pipeline_mode = #tpu.pipeline_mode<synchronous>, transform_indices = @transform_7, window_bounds = array<i64: 128, 128>}, {pipeline_mode = #tpu.pipeline_mode<synchronous>, transform_indices = @transform_8, window_bounds = array<i64: 1, 128>}, {transform_indices = @transform_9, window_bounds = array<i64: 8, 128>}]} {
    %c0 = arith.constant 0 : index
    %c0_0 = arith.constant 0 : index
    %0 = vector.load %arg1[%c0, %c0_0] : memref<8x32xf32, #tpu.memory_space<vmem>>, vector<8x32xf32>
    %c0_1 = arith.constant 0 : index
    %c0_2 = arith.constant 0 : index
    %1 = vector.load %arg2[%c0_1, %c0_2] : memref<32x128xf32, #tpu.memory_space<vmem>>, vector<32x128xf32>
    %cst = arith.constant dense<0.000000e+00> : vector<8x128xf32>
    %2 = tpu.matmul %0, %1, %cst {dimension_numbers = #tpu.dot_dimension_numbers<[1], [0], [0], [1], [0, 0, 1, 1], [], []>} : vector<8x32xf32>, vector<32x128xf32>, vector<8x128xf32> -> vector<8x128xf32>
    %c0_3 = arith.constant 0 : index
    %c0_4 = arith.constant 0 : index
    %3 = vector.load %arg3[%c0_3, %c0_4] : memref<1x128xf32, #tpu.memory_space<vmem>>, vector<1x128xf32>
    %4 = vector.broadcast %3 : vector<1x128xf32> to vector<8x128xf32>
    %5 = arith.addf %2, %4 : vector<8x128xf32>
    %cst_5 = arith.constant 0.000000e+00 : f32
    %6 = vector.broadcast %cst_5 : f32 to vector<8x128xf32>
    %7 = arith.maximumf %5, %6 : vector<8x128xf32>
    %c0_6 = arith.constant 0 : index
    %c0_7 = arith.constant 0 : index
    %8 = vector.load %arg4[%c0_6, %c0_7] : memref<128x128xf32, #tpu.memory_space<vmem>>, vector<128x128xf32>
    %cst_8 = arith.constant dense<0.000000e+00> : vector<8x128xf32>
    %9 = tpu.matmul %7, %8, %cst_8 {dimension_numbers = #tpu.dot_dimension_numbers<[1], [0], [0], [1], [0, 0, 1, 1], [], []>} : vector<8x128xf32>, vector<128x128xf32>, vector<8x128xf32> -> vector<8x128xf32>
    %c0_9 = arith.constant 0 : index
    %c0_10 = arith.constant 0 : index
    %10 = vector.load %arg5[%c0_9, %c0_10] : memref<1x128xf32, #tpu.memory_space<vmem>>, vector<1x128xf32>
    %11 = vector.broadcast %10 : vector<1x128xf32> to vector<8x128xf32>
    %12 = arith.addf %9, %11 : vector<8x128xf32>
    %cst_11 = arith.constant 0.000000e+00 : f32
    %13 = vector.broadcast %cst_11 : f32 to vector<8x128xf32>
    %14 = arith.maximumf %12, %13 : vector<8x128xf32>
    %c0_12 = arith.constant 0 : index
    %c0_13 = arith.constant 0 : index
    %15 = vector.load %arg6[%c0_12, %c0_13] : memref<128x128xf32, #tpu.memory_space<vmem>>, vector<128x128xf32>
    %cst_14 = arith.constant dense<0.000000e+00> : vector<8x128xf32>
    %16 = tpu.matmul %14, %15, %cst_14 {dimension_numbers = #tpu.dot_dimension_numbers<[1], [0], [0], [1], [0, 0, 1, 1], [], []>} : vector<8x128xf32>, vector<128x128xf32>, vector<8x128xf32> -> vector<8x128xf32>
    %c0_15 = arith.constant 0 : index
    %c0_16 = arith.constant 0 : index
    %17 = vector.load %arg7[%c0_15, %c0_16] : memref<1x128xf32, #tpu.memory_space<vmem>>, vector<1x128xf32>
    %18 = vector.broadcast %17 : vector<1x128xf32> to vector<8x128xf32>
    %19 = arith.addf %16, %18 : vector<8x128xf32>
    %cst_17 = arith.constant 0.000000e+00 : f32
    %20 = vector.broadcast %cst_17 : f32 to vector<8x128xf32>
    %21 = arith.maximumf %19, %20 : vector<8x128xf32>
    %c0_18 = arith.constant 0 : index
    %c0_19 = arith.constant 0 : index
    %22 = vector.load %arg8[%c0_18, %c0_19] : memref<128x128xf32, #tpu.memory_space<vmem>>, vector<128x128xf32>
    %cst_20 = arith.constant dense<0.000000e+00> : vector<8x128xf32>
    %23 = tpu.matmul %21, %22, %cst_20 {dimension_numbers = #tpu.dot_dimension_numbers<[1], [0], [0], [1], [0, 0, 1, 1], [], []>} : vector<8x128xf32>, vector<128x128xf32>, vector<8x128xf32> -> vector<8x128xf32>
    %c0_21 = arith.constant 0 : index
    %c0_22 = arith.constant 0 : index
    %24 = vector.load %arg9[%c0_21, %c0_22] : memref<1x128xf32, #tpu.memory_space<vmem>>, vector<1x128xf32>
    %25 = vector.broadcast %24 : vector<1x128xf32> to vector<8x128xf32>
    %26 = arith.addf %23, %25 : vector<8x128xf32>
    %cst_23 = arith.constant dense<0xFF800000> : vector<8xf32>
    %27 = vector.multi_reduction <maximumf>, %26, %cst_23 [1] : vector<8x128xf32> to vector<8xf32>
    %28 = vector.shape_cast %27 : vector<8xf32> to vector<8x1xf32>
    %29 = vector.broadcast %28 : vector<8x1xf32> to vector<8x128xf32>
    %30 = arith.subf %26, %29 : vector<8x128xf32>
    %31 = math.exp %30 : vector<8x128xf32>
    %cst_24 = arith.constant dense<0.000000e+00> : vector<8xf32>
    %32 = vector.multi_reduction <add>, %31, %cst_24 [1] : vector<8x128xf32> to vector<8xf32>
    %33 = vector.shape_cast %32 : vector<8xf32> to vector<8x1xf32>
    %34 = math.log %33 : vector<8x1xf32>
    %35 = vector.broadcast %34 : vector<8x1xf32> to vector<8x128xf32>
    %36 = arith.subf %30, %35 : vector<8x128xf32>
    %c0_25 = arith.constant 0 : index
    %c0_26 = arith.constant 0 : index
    %37 = vector.load %arg10[%c0_25, %c0_26] : memref<8x128xf32, #tpu.memory_space<vmem>>, vector<8x128xf32>
    tpu.vector_store %arg10[%c0_25, %c0_26], %36 {strides = array<i32>} : memref<8x128xf32, #tpu.memory_space<vmem>>, vector<8x128xf32>,
    return
  }
  func.func @transform_0(%arg0: i32) -> (i32, i32) {
    %c0_i32 = arith.constant 0 : i32
    %c0_i32_0 = arith.constant 0 : i32
    return %arg0, %c0_i32 : i32, i32
  }
  func.func @transform_1(%arg0: i32) -> (i32, i32) {
    %c0_i32 = arith.constant 0 : i32
    %c0_i32_0 = arith.constant 0 : i32
    %c0_i32_1 = arith.constant 0 : i32
    return %c0_i32, %c0_i32_0 : i32, i32
  }
  func.func @transform_2(%arg0: i32) -> (i32, i32) {
    %c0_i32 = arith.constant 0 : i32
    %c0_i32_0 = arith.constant 0 : i32
    %c0_i32_1 = arith.constant 0 : i32
    return %c0_i32, %c0_i32_0 : i32, i32
  }
  func.func @transform_3(%arg0: i32) -> (i32, i32) {
    %c0_i32 = arith.constant 0 : i32
    %c0_i32_0 = arith.constant 0 : i32
    %c0_i32_1 = arith.constant 0 : i32
    return %c0_i32, %c0_i32_0 : i32, i32
  }
  func.func @transform_4(%arg0: i32) -> (i32, i32) {
    %c0_i32 = arith.constant 0 : i32
    %c0_i32_0 = arith.constant 0 : i32
    %c0_i32_1 = arith.constant 0 : i32
    return %c0_i32, %c0_i32_0 : i32, i32
  }
  func.func @transform_5(%arg0: i32) -> (i32, i32) {
    %c0_i32 = arith.constant 0 : i32
    %c0_i32_0 = arith.constant 0 : i32
    %c0_i32_1 = arith.constant 0 : i32
    return %c0_i32, %c0_i32_0 : i32, i32
  }
  func.func @transform_6(%arg0: i32) -> (i32, i32) {
    %c0_i32 = arith.constant 0 : i32
    %c0_i32_0 = arith.constant 0 : i32
    %c0_i32_1 = arith.constant 0 : i32
    return %c0_i32, %c0_i32_0 : i32, i32
  }
  func.func @transform_7(%arg0: i32) -> (i32, i32) {
    %c0_i32 = arith.constant 0 : i32
    %c0_i32_0 = arith.constant 0 : i32
    %c0_i32_1 = arith.constant 0 : i32
    return %c0_i32, %c0_i32_0 : i32, i32
  }
  func.func @transform_8(%arg0: i32) -> (i32, i32) {
    %c0_i32 = arith.constant 0 : i32
    %c0_i32_0 = arith.constant 0 : i32
    %c0_i32_1 = arith.constant 0 : i32
    return %c0_i32, %c0_i32_0 : i32, i32
  }
  func.func @transform_9(%arg0: i32) -> (i32, i32) {
    %c0_i32 = arith.constant 0 : i32
    %c0_i32_0 = arith.constant 0 : i32
    return %arg0, %c0_i32 : i32, i32
  }
}

</mosaic_0001>

<llo_original>
// kernel: fwd.1
$region0: #{fwd.1}
  #allocation0 [shape = 'u32[]', space=smem, size = 0x4, offset = 0x4, fixed_abs, tag = 'smem constant byte address 0x4 - core index']
  #allocation1 [shape = 'u32[144,128]{1,0:T(1,128)}', space=vmem, size = 0x12000, scoped, tag = 'internal scratch']
  %s0 = inlined_call_operand.hbm [shape: f32[8,32], index: 0, kind: input, shape index: {}]
  %s1 = inlined_call_operand.hbm [shape: f32[32,128], index: 1, kind: input, shape index: {}]
  %s2 = inlined_call_operand.hbm [shape: f32[1,128], index: 2, kind: input, shape index: {}]
  %s3 = inlined_call_operand.hbm [shape: f32[128,128], index: 3, kind: input, shape index: {}]
  %s4 = inlined_call_operand.vmem [shape: f32[1,128], index: 4, kind: input, shape index: {}]
  %s5 = inlined_call_operand.hbm [shape: f32[128,128], index: 5, kind: input, shape index: {}]
  %s6 = inlined_call_operand.vmem [shape: f32[1,128], index: 6, kind: input, shape index: {}]
  %s7 = inlined_call_operand.hbm [shape: f32[128,128], index: 7, kind: input, shape index: {}]
  %s8 = inlined_call_operand.vmem [shape: f32[1,128], index: 8, kind: input, shape index: {}]
  %s9 = inlined_call_operand.hbm [shape: f32[8,128], index: 9, kind: output, shape index: {}]
  %s10 = sld [smem:[#allocation0]]
  $region70: #{fwd.1} parent=0
    _
  %s12 = ssub.s32 1, %s10
  %s13 = scalar_select 0, %s12, %s10
  $region1: #{fwd.1} parent=0
    #allocation2 [shape = 'u8[4096]{0}', space=vmem, size = 0x1000, scoped, tag = 'input window, operand 0, single buffered']
    #allocation3 [shape = 's32[1]{0}', space=sflag, size = 0x4, scoped, tag = 'scoped memory for fwd.1']
    #allocation4 [shape = 's32[1]{0}', space=sflag, size = 0x4, scoped, tag = 'scoped memory for fwd.1']
    #allocation5 [shape = 'u8[16384]{0}', space=vmem, size = 0x4000, scoped, tag = 'input window, operand 1, single buffered']
    #allocation6 [shape = 's32[1]{0}', space=sflag, size = 0x4, scoped, tag = 'scoped memory for fwd.1']
    #allocation7 [shape = 'u8[512]{0}', space=vmem, size = 0x400, scoped, tag = 'input window, operand 2, single buffered']
    #allocation8 [shape = 'u8[65536]{0}', space=vmem, size = 0x10000, scoped, tag = 'input window, operand 3, single buffered']
    #allocation9 [shape = 's32[1]{0}', space=sflag, size = 0x4, scoped, tag = 'scoped memory for fwd.1']
    #allocation10 [shape = 'u8[65536]{0}', space=vmem, size = 0x10000, scoped, tag = 'input window, operand 5, single buffered']
    #allocation11 [shape = 'u8[65536]{0}', space=vmem, size = 0x10000, scoped, tag = 'input window, operand 7, single buffered']
    #allocation12 [shape = 's32[1]{0}', space=sflag, size = 0x4, scoped, tag = 'scoped memory for fwd.1']
    #allocation13 [shape = 'u8[4096]{0}', space=vmem, size = 0x1000, scoped, tag = 'output window, operand 0, single buffered']
    %14 = vsyncpa [#allocation3], 0
    %15 = vsyncpa [#allocation6], 0
    %16 = vsyncpa [#allocation9], 0
    %17 = vsyncpa [#allocation12], 0
    %18 = vsyncpa [#allocation4], 0
    // Predicated region
    $region2: #{fwd.1} parent=1 // pred_check
      _
    $region3: #{fwd.1} parent=1 // pred_check_branch
      %20 = sbr.rel (0) target = $region5
    $region4: #{fwd.1} parent=1 // pred_region
      %s22 = ssub.s32 128, 128
      %23 = vsyncadd [#allocation3], %s22
      %s25 = sshll.u32 [#allocation2], 4
      %s26 = int_to_ptr.vmem [resolvable:$true] %s25
      %28 = dma.hbm_to_vmem [thread:$0]  %s0, 128, %s26, [#allocation3]
    $region5: #{fwd.1} parent=1 // pred_fallthru
      _
    // Predicated region
    $region6: #{fwd.1} parent=1 // pred_check
      _
    $region7: #{fwd.1} parent=1 // pred_check_branch
      %30 = sbr.rel (0) target = $region9
    $region8: #{fwd.1} parent=1 // pred_region
      %s32 = ssub.s32 512, 512
      %33 = vsyncadd [#allocation6], %s32
      %s34 = sshll.u32 [#allocation5], 4
      %s35 = int_to_ptr.vmem [resolvable:$true] %s34
      %40 = dma.hbm_to_vmem [thread:$0]  %s1, 512, %s35, [#allocation6], 128, 128, 8
    $region9: #{fwd.1} parent=1 // pred_fallthru
      _
    // Predicated region
    $region10: #{fwd.1} parent=1 // pred_check
      _
    $region11: #{fwd.1} parent=1 // pred_check_branch
      %42 = sbr.rel (0) target = $region13
    $region12: #{fwd.1} parent=1 // pred_region
      %s44 = ssub.s32 16, 16
      %45 = vsyncadd [#allocation6], %s44
      %s47 = sshll.u32 [#allocation7], 4
      %s48 = int_to_ptr.vmem [resolvable:$true] %s47
      %50 = dma.hbm_to_vmem [thread:$0]  %s2, 16, %s48, [#allocation6]
    $region13: #{fwd.1} parent=1 // pred_fallthru
      _
    // Predicated region
    $region14: #{fwd.1} parent=1 // pred_check
      _
    $region15: #{fwd.1} parent=1 // pred_check_branch
      %52 = sbr.rel (0) target = $region17
    $region16: #{fwd.1} parent=1 // pred_region
      %s54 = ssub.s32 2048, 2048
      %55 = vsyncadd [#allocation9], %s54
      %s56 = sshll.u32 [#allocation8], 4
      %s57 = int_to_ptr.vmem [resolvable:$true] %s56
      %62 = dma.hbm_to_vmem [thread:$0]  %s3, 2048, %s57, [#allocation9], 128, 128, 8
    $region17: #{fwd.1} parent=1 // pred_fallthru
      _
    // Predicated region
    $region18: #{fwd.1} parent=1 // pred_check
      _
    $region19: #{fwd.1} parent=1 // pred_check_branch
      %64 = sbr.rel (0) target = $region21
    $region20: #{fwd.1} parent=1 // pred_region
      _
    $region21: #{fwd.1} parent=1 // pred_fallthru
      _
    // Predicated region
    $region22: #{fwd.1} parent=1 // pred_check
      _
    $region23: #{fwd.1} parent=1 // pred_check_branch
      %66 = sbr.rel (0) target = $region25
    $region24: #{fwd.1} parent=1 // pred_region
      %s68 = ssub.s32 2048, 2048
      %69 = vsyncadd [#allocation9], %s68
      %s70 = sshll.u32 [#allocation10], 4
      %s71 = int_to_ptr.vmem [resolvable:$true] %s70
      %76 = dma.hbm_to_vmem [thread:$0]  %s5, 2048, %s71, [#allocation9], 128, 128, 8
    $region25: #{fwd.1} parent=1 // pred_fallthru
      _
    // Predicated region
    $region26: #{fwd.1} parent=1 // pred_check
      _
    $region27: #{fwd.1} parent=1 // pred_check_branch
      %78 = sbr.rel (0) target = $region29
    $region28: #{fwd.1} parent=1 // pred_region
      _
    $region29: #{fwd.1} parent=1 // pred_fallthru
      _
    // Predicated region
    $region30: #{fwd.1} parent=1 // pred_check
      _
    $region31: #{fwd.1} parent=1 // pred_check_branch
      %80 = sbr.rel (0) target = $region33
    $region32: #{fwd.1} parent=1 // pred_region
      %s82 = ssub.s32 2048, 2048
      %83 = vsyncadd [#allocation12], %s82
      %s84 = sshll.u32 [#allocation11], 4
      %s85 = int_to_ptr.vmem [resolvable:$true] %s84
      %90 = dma.hbm_to_vmem [thread:$0]  %s7, 2048, %s85, [#allocation12], 128, 128, 8
    $region33: #{fwd.1} parent=1 // pred_fallthru
      _
    // Predicated region
    $region34: #{fwd.1} parent=1 // pred_check
      _
    $region35: #{fwd.1} parent=1 // pred_check_branch
      %92 = sbr.rel (0) target = $region37
    $region36: #{fwd.1} parent=1 // pred_region
      _
    $region37: #{fwd.1} parent=1 // pred_fallthru
      _
    // Predicated region
    $region38: #{fwd.1} parent=1 // pred_check
      _
    $region39: #{fwd.1} parent=1 // pred_check_branch
      %94 = sbr.rel (0) target = $region41
    $region40: #{fwd.1} parent=1 // pred_region
      %95 = dma.done [#allocation3], 128
    $region41: #{fwd.1} parent=1 // pred_fallthru
      _
    // Predicated region
    $region42: #{fwd.1} parent=1 // pred_check
      _
    $region43: #{fwd.1} parent=1 // pred_check_branch
      %97 = sbr.rel (0) target = $region45
    $region44: #{fwd.1} parent=1 // pred_region
      %98 = dma.done [#allocation6], 512
    $region45: #{fwd.1} parent=1 // pred_fallthru
      _
    // Predicated region
    $region46: #{fwd.1} parent=1 // pred_check
      _
    $region47: #{fwd.1} parent=1 // pred_check_branch
      %100 = sbr.rel (0) target = $region49
    $region48: #{fwd.1} parent=1 // pred_region
      %101 = dma.done [#allocation6], 16
    $region49: #{fwd.1} parent=1 // pred_fallthru
      _
    // Predicated region
    $region50: #{fwd.1} parent=1 // pred_check
      _
    $region51: #{fwd.1} parent=1 // pred_check_branch
      %103 = sbr.rel (0) target = $region53
    $region52: #{fwd.1} parent=1 // pred_region
      %104 = dma.done [#allocation9], 2048
    $region53: #{fwd.1} parent=1 // pred_fallthru
      _
    // Predicated region
    $region54: #{fwd.1} parent=1 // pred_check
      _
    $region55: #{fwd.1} parent=1 // pred_check_branch
      %106 = sbr.rel (0) target = $region57
    $region56: #{fwd.1} parent=1 // pred_region
      %107 = dma.done [#allocation9], 2048
    $region57: #{fwd.1} parent=1 // pred_fallthru
      _
    // Predicated region
    $region58: #{fwd.1} parent=1 // pred_check
      _
    $region59: #{fwd.1} parent=1 // pred_check_branch
      %109 = sbr.rel (0) target = $region61
    $region60: #{fwd.1} parent=1 // pred_region
      %110 = dma.done [#allocation12], 2048
    $region61: #{fwd.1} parent=1 // pred_fallthru
      _
    %v111 = vld [vmem:[#allocation2] sm:$0xff]
    %v112 = vld [vmem:[#allocation5] sm:$0xff]
    %v113 = vld [vmem:[#allocation5 + $0x8] sm:$0xff]
    %v114 = vld [vmem:[#allocation5 + $0x10] sm:$0xff]
    %v115 = vld [vmem:[#allocation5 + $0x18] sm:$0xff]
    %v116 = vld [vmem:[#allocation7] sm:$0x1]
    %v118 = vlaneseq
    %v119 = vshrl.u32 %v118, 7
    %v120 = vsub.s32 0, %v119
    %v121 = vrot.slane %v116, %v120
    %vm123 = vcmask 261120
    %v125 = vsel %vm123, %v111, 0
    %127 = vmatprep.subr.mxu0 0.0
    %128 = vmatpush1.msra.mxu0 0.0
    %129 = vmatprep.subr.mxu0 0.0
    %130 = vmatpush1.msra.mxu0 0.0
    %131 = vmatprep.subr.mxu0 0.0
    %132 = vmatpush1.msra.mxu0 0.0
    %133 = vmatprep.subr.mxu0 0.0
    %134 = vmatpush1.msra.mxu0 0.0
    %135 = vmatprep.subr.mxu0 0.0
    %136 = vmatpush1.msra.mxu0 0.0
    %137 = vmatprep.subr.mxu0 0.0
    %138 = vmatpush1.msra.mxu0 0.0
    %139 = vmatprep.subr.mxu0 0.0
    %140 = vmatpush1.msra.mxu0 0.0
    %141 = vmatprep.subr.mxu0 0.0
    %142 = vmatpush1.msra.mxu0 0.0
    %143 = vmatprep.subr.mxu0 0.0
    %144 = vmatpush1.msra.mxu0 0.0
    %145 = vmatprep.subr.mxu0 0.0
    %146 = vmatpush1.msra.mxu0 0.0
    %147 = vmatprep.subr.mxu0 0.0
    %148 = vmatpush1.msra.mxu0 0.0
    %149 = vmatprep.subr.mxu0 0.0
    %150 = vmatpush1.msra.mxu0 0.0
    %151 = vmatprep.subr.mxu0 0.0
    %152 = vmatpush1.msra.mxu0 %v115
    %153 = vmatprep.subr.mxu0 0.0
    %154 = vmatpush1.msra.mxu0 %v114
    %155 = vmatprep.subr.mxu0 0.0
    %156 = vmatpush1.msra.mxu0 %v113
    %157 = vmatprep.subr.mxu0 0.0
    %158 = vmatpush1.msra.mxu0 %v112
    %159 = vmatprep.subr.mxu0 0.0
    %160 = vmatpush2.msra.mxu0 0.0
    %161 = vmatprep.subr.mxu0 0.0
    %162 = vmatpush2.msra.mxu0 0.0
    %163 = vmatprep.subr.mxu0 0.0
    %164 = vmatpush2.msra.mxu0 0.0
    %165 = vmatprep.subr.mxu0 0.0
    %166 = vmatpush2.msra.mxu0 0.0
    %167 = vmatprep.subr.mxu0 0.0
    %168 = vmatpush2.msra.mxu0 0.0
    %169 = vmatprep.subr.mxu0 0.0
    %170 = vmatpush2.msra.mxu0 0.0
    %171 = vmatprep.subr.mxu0 0.0
    %172 = vmatpush2.msra.mxu0 0.0
    %173 = vmatprep.subr.mxu0 0.0
    %174 = vmatpush2.msra.mxu0 0.0
    %175 = vmatprep.subr.mxu0 0.0
    %176 = vmatpush2.msra.mxu0 0.0
    %177 = vmatprep.subr.mxu0 0.0
    %178 = vmatpush2.msra.mxu0 0.0
    %179 = vmatprep.subr.mxu0 0.0
    %180 = vmatpush2.msra.mxu0 0.0
    %181 = vmatprep.subr.mxu0 0.0
    %182 = vmatpush2.msra.mxu0 0.0
    %183 = vmatprep.subr.mxu0 0.0
    %184 = vmatpush2.msra.mxu0 0.0
    %185 = vmatprep.subr.mxu0 0.0
    %186 = vmatpush2.msra.mxu0 0.0
    %187 = vmatprep.subr.mxu0 0.0
    %188 = vmatpush2.msra.mxu0 0.0
    %189 = vmatprep.subr.mxu0 0.0
    %190 = vmatpush2.msra.mxu0 0.0
    %191 = vmatprep.mubr.f32.mxu0 0.0
    %192 = vmatmul.mubr.f32.gmra.mxu0 %v125
    %v193 = vpop.f32.mrf.mxu0
    %v194 = vadd.f32 %v121, %v193
    %v195 = vpop.f32.mrf.mxu0
    %196 = vdwg.mxu0
    %v197 = vmax.f32 %v194, 0.0
    %v198 = vld [vmem:[#allocation8] sm:$0xff]
    %v199 = vld [vmem:[#allocation8 + $0x8] sm:$0xff]
    %v200 = vld [vmem:[#allocation8 + $0x10] sm:$0xff]
    %v201 = vld [vmem:[#allocation8 + $0x18] sm:$0xff]
    %v202 = vld [vmem:[#allocation8 + $0x20] sm:$0xff]
    %v203 = vld [vmem:[#allocation8 + $0x28] sm:$0xff]
    %v204 = vld [vmem:[#allocation8 + $0x30] sm:$0xff]
    %v205 = vld [vmem:[#allocation8 + $0x38] sm:$0xff]
    %v206 = vld [vmem:[#allocation8 + $0x40] sm:$0xff]
    %v207 = vld [vmem:[#allocation8 + $0x48] sm:$0xff]
    %v208 = vld [vmem:[#allocation8 + $0x50] sm:$0xff]
    %v209 = vld [vmem:[#allocation8 + $0x58] sm:$0xff]
    %v210 = vld [vmem:[#allocation8 + $0x60] sm:$0xff]
    %v211 = vld [vmem:[#allocation8 + $0x68] sm:$0xff]
    %v212 = vld [vmem:[#allocation8 + $0x70] sm:$0xff]
    %v213 = vld [vmem:[#allocation8 + $0x78] sm:$0xff]
    %v214 = vld [vmem:[%s4] sm:$0x1]
    %v216 = vlaneseq
    %v217 = vshrl.u32 %v216, 7
    %v218 = vsub.s32 0, %v217
    %v219 = vrot.slane %v214, %v218
    %221 = vmatprep.subr.mxu0 0.0
    %222 = vmatpush1.msra.mxu0 %v213
    %223 = vmatprep.subr.mxu0 0.0
    %224 = vmatpush1.msra.mxu0 %v212
    %225 = vmatprep.subr.mxu0 0.0
    %226 = vmatpush1.msra.mxu0 %v211
    %227 = vmatprep.subr.mxu0 0.0
    %228 = vmatpush1.msra.mxu0 %v210
    %229 = vmatprep.subr.mxu0 0.0
    %230 = vmatpush1.msra.mxu0 %v209
    %231 = vmatprep.subr.mxu0 0.0
    %232 = vmatpush1.msra.mxu0 %v208
    %233 = vmatprep.subr.mxu0 0.0
    %234 = vmatpush1.msra.mxu0 %v207
    %235 = vmatprep.subr.mxu0 0.0
    %236 = vmatpush1.msra.mxu0 %v206
    %237 = vmatprep.subr.mxu0 0.0
    %238 = vmatpush1.msra.mxu0 %v205
    %239 = vmatprep.subr.mxu0 0.0
    %240 = vmatpush1.msra.mxu0 %v204
    %241 = vmatprep.subr.mxu0 0.0
    %242 = vmatpush1.msra.mxu0 %v203
    %243 = vmatprep.subr.mxu0 0.0
    %244 = vmatpush1.msra.mxu0 %v202
    %245 = vmatprep.subr.mxu0 0.0
    %246 = vmatpush1.msra.mxu0 %v201
    %247 = vmatprep.subr.mxu0 0.0
    %248 = vmatpush1.msra.mxu0 %v200
    %249 = vmatprep.subr.mxu0 0.0
    %250 = vmatpush1.msra.mxu0 %v199
    %251 = vmatprep.subr.mxu0 0.0
    %252 = vmatpush1.msra.mxu0 %v198
    %253 = vmatprep.subr.mxu0 0.0
    %254 = vmatpush2.msra.mxu0 0.0
    %255 = vmatprep.subr.mxu0 0.0
    %256 = vmatpush2.msra.mxu0 0.0
    %257 = vmatprep.subr.mxu0 0.0
    %258 = vmatpush2.msra.mxu0 0.0
    %259 = vmatprep.subr.mxu0 0.0
    %260 = vmatpush2.msra.mxu0 0.0
    %261 = vmatprep.subr.mxu0 0.0
    %262 = vmatpush2.msra.mxu0 0.0
    %263 = vmatprep.subr.mxu0 0.0
    %264 = vmatpush2.msra.mxu0 0.0
    %265 = vmatprep.subr.mxu0 0.0
    %266 = vmatpush2.msra.mxu0 0.0
    %267 = vmatprep.subr.mxu0 0.0
    %268 = vmatpush2.msra.mxu0 0.0
    %269 = vmatprep.subr.mxu0 0.0
    %270 = vmatpush2.msra.mxu0 0.0
    %271 = vmatprep.subr.mxu0 0.0
    %272 = vmatpush2.msra.mxu0 0.0
    %273 = vmatprep.subr.mxu0 0.0
    %274 = vmatpush2.msra.mxu0 0.0
    %275 = vmatprep.subr.mxu0 0.0
    %276 = vmatpush2.msra.mxu0 0.0
    %277 = vmatprep.subr.mxu0 0.0
    %278 = vmatpush2.msra.mxu0 0.0
    %279 = vmatprep.subr.mxu0 0.0
    %280 = vmatpush2.msra.mxu0 0.0
    %281 = vmatprep.subr.mxu0 0.0
    %282 = vmatpush2.msra.mxu0 0.0
    %283 = vmatprep.subr.mxu0 0.0
    %284 = vmatpush2.msra.mxu0 0.0
    %285 = vmatprep.mubr.f32.mxu0 0.0
    %286 = vmatmul.mubr.f32.gmra.mxu0 %v197
    %v287 = vpop.f32.mrf.mxu0
    %v288 = vadd.f32 %v219, %v287
    %v289 = vpop.f32.mrf.mxu0
    %290 = vdwg.mxu0
    %v291 = vmax.f32 %v288, 0.0
    %v292 = vld [vmem:[#allocation10] sm:$0xff]
    %v293 = vld [vmem:[#allocation10 + $0x8] sm:$0xff]
    %v294 = vld [vmem:[#allocation10 + $0x10] sm:$0xff]
    %v295 = vld [vmem:[#allocation10 + $0x18] sm:$0xff]
    %v296 = vld [vmem:[#allocation10 + $0x20] sm:$0xff]
    %v297 = vld [vmem:[#allocation10 + $0x28] sm:$0xff]
    %v298 = vld [vmem:[#allocation10 + $0x30] sm:$0xff]
    %v299 = vld [vmem:[#allocation10 + $0x38] sm:$0xff]
    %v300 = vld [vmem:[#allocation10 + $0x40] sm:$0xff]
    %v301 = vld [vmem:[#allocation10 + $0x48] sm:$0xff]
    %v302 = vld [vmem:[#allocation10 + $0x50] sm:$0xff]
    %v303 = vld [vmem:[#allocation10 + $0x58] sm:$0xff]
    %v304 = vld [vmem:[#allocation10 + $0x60] sm:$0xff]
    %v305 = vld [vmem:[#allocation10 + $0x68] sm:$0xff]
    %v306 = vld [vmem:[#allocation10 + $0x70] sm:$0xff]
    %v307 = vld [vmem:[#allocation10 + $0x78] sm:$0xff]
    %v308 = vld [vmem:[%s6] sm:$0x1]
    %v310 = vlaneseq
    %v311 = vshrl.u32 %v310, 7
    %v312 = vsub.s32 0, %v311
    %v313 = vrot.slane %v308, %v312
    %315 = vmatprep.subr.mxu0 0.0
    %316 = vmatpush1.msra.mxu0 %v307
    %317 = vmatprep.subr.mxu0 0.0
    %318 = vmatpush1.msra.mxu0 %v306
    %319 = vmatprep.subr.mxu0 0.0
    %320 = vmatpush1.msra.mxu0 %v305
    %321 = vmatprep.subr.mxu0 0.0
    %322 = vmatpush1.msra.mxu0 %v304
    %323 = vmatprep.subr.mxu0 0.0
    %324 = vmatpush1.msra.mxu0 %v303
    %325 = vmatprep.subr.mxu0 0.0
    %326 = vmatpush1.msra.mxu0 %v302
    %327 = vmatprep.subr.mxu0 0.0
    %328 = vmatpush1.msra.mxu0 %v301
    %329 = vmatprep.subr.mxu0 0.0
    %330 = vmatpush1.msra.mxu0 %v300
    %331 = vmatprep.subr.mxu0 0.0
    %332 = vmatpush1.msra.mxu0 %v299
    %333 = vmatprep.subr.mxu0 0.0
    %334 = vmatpush1.msra.mxu0 %v298
    %335 = vmatprep.subr.mxu0 0.0
    %336 = vmatpush1.msra.mxu0 %v297
    %337 = vmatprep.subr.mxu0 0.0
    %338 = vmatpush1.msra.mxu0 %v296
    %339 = vmatprep.subr.mxu0 0.0
    %340 = vmatpush1.msra.mxu0 %v295
    %341 = vmatprep.subr.mxu0 0.0
    %342 = vmatpush1.msra.mxu0 %v294
    %343 = vmatprep.subr.mxu0 0.0
    %344 = vmatpush1.msra.mxu0 %v293
    %345 = vmatprep.subr.mxu0 0.0
    %346 = vmatpush1.msra.mxu0 %v292
    %347 = vmatprep.subr.mxu0 0.0
    %348 = vmatpush2.msra.mxu0 0.0
    %349 = vmatprep.subr.mxu0 0.0
    %350 = vmatpush2.msra.mxu0 0.0
    %351 = vmatprep.subr.mxu0 0.0
    %352 = vmatpush2.msra.mxu0 0.0
    %353 = vmatprep.subr.mxu0 0.0
    %354 = vmatpush2.msra.mxu0 0.0
    %355 = vmatprep.subr.mxu0 0.0
    %356 = vmatpush2.msra.mxu0 0.0
    %357 = vmatprep.subr.mxu0 0.0
    %358 = vmatpush2.msra.mxu0 0.0
    %359 = vmatprep.subr.mxu0 0.0
    %360 = vmatpush2.msra.mxu0 0.0
    %361 = vmatprep.subr.mxu0 0.0
    %362 = vmatpush2.msra.mxu0 0.0
    %363 = vmatprep.subr.mxu0 0.0
    %364 = vmatpush2.msra.mxu0 0.0
    %365 = vmatprep.subr.mxu0 0.0
    %366 = vmatpush2.msra.mxu0 0.0
    %367 = vmatprep.subr.mxu0 0.0
    %368 = vmatpush2.msra.mxu0 0.0
    %369 = vmatprep.subr.mxu0 0.0
    %370 = vmatpush2.msra.mxu0 0.0
    %371 = vmatprep.subr.mxu0 0.0
    %372 = vmatpush2.msra.mxu0 0.0
    %373 = vmatprep.subr.mxu0 0.0
    %374 = vmatpush2.msra.mxu0 0.0
    %375 = vmatprep.subr.mxu0 0.0
    %376 = vmatpush2.msra.mxu0 0.0
    %377 = vmatprep.subr.mxu0 0.0
    %378 = vmatpush2.msra.mxu0 0.0
    %379 = vmatprep.mubr.f32.mxu0 0.0
    %380 = vmatmul.mubr.f32.gmra.mxu0 %v291
    %v381 = vpop.f32.mrf.mxu0
    %v382 = vadd.f32 %v313, %v381
    %v383 = vpop.f32.mrf.mxu0
    %384 = vdwg.mxu0
    %v385 = vmax.f32 %v382, 0.0
    %v386 = vld [vmem:[#allocation11] sm:$0xff]
    %v387 = vld [vmem:[#allocation11 + $0x8] sm:$0xff]
    %v388 = vld [vmem:[#allocation11 + $0x10] sm:$0xff]
    %v389 = vld [vmem:[#allocation11 + $0x18] sm:$0xff]
    %v390 = vld [vmem:[#allocation11 + $0x20] sm:$0xff]
    %v391 = vld [vmem:[#allocation11 + $0x28] sm:$0xff]
    %v392 = vld [vmem:[#allocation11 + $0x30] sm:$0xff]
    %v393 = vld [vmem:[#allocation11 + $0x38] sm:$0xff]
    %v394 = vld [vmem:[#allocation11 + $0x40] sm:$0xff]
    %v395 = vld [vmem:[#allocation11 + $0x48] sm:$0xff]
    %v396 = vld [vmem:[#allocation11 + $0x50] sm:$0xff]
    %v397 = vld [vmem:[#allocation11 + $0x58] sm:$0xff]
    %v398 = vld [vmem:[#allocation11 + $0x60] sm:$0xff]
    %v399 = vld [vmem:[#allocation11 + $0x68] sm:$0xff]
    %v400 = vld [vmem:[#allocation11 + $0x70] sm:$0xff]
    %v401 = vld [vmem:[#allocation11 + $0x78] sm:$0xff]
    %v402 = vld [vmem:[%s8] sm:$0x1]
    %v404 = vlaneseq
    %v405 = vshrl.u32 %v404, 7
    %v406 = vsub.s32 0, %v405
    %v407 = vrot.slane %v402, %v406
    %409 = vmatprep.subr.mxu0 0.0
    %410 = vmatpush1.msra.mxu0 %v401
    %411 = vmatprep.subr.mxu0 0.0
    %412 = vmatpush1.msra.mxu0 %v400
    %413 = vmatprep.subr.mxu0 0.0
    %414 = vmatpush1.msra.mxu0 %v399
    %415 = vmatprep.subr.mxu0 0.0
    %416 = vmatpush1.msra.mxu0 %v398
    %417 = vmatprep.subr.mxu0 0.0
    %418 = vmatpush1.msra.mxu0 %v397
    %419 = vmatprep.subr.mxu0 0.0
    %420 = vmatpush1.msra.mxu0 %v396
    %421 = vmatprep.subr.mxu0 0.0
    %422 = vmatpush1.msra.mxu0 %v395
    %423 = vmatprep.subr.mxu0 0.0
    %424 = vmatpush1.msra.mxu0 %v394
    %425 = vmatprep.subr.mxu0 0.0
    %426 = vmatpush1.msra.mxu0 %v393
    %427 = vmatprep.subr.mxu0 0.0
    %428 = vmatpush1.msra.mxu0 %v392
    %429 = vmatprep.subr.mxu0 0.0
    %430 = vmatpush1.msra.mxu0 %v391
    %431 = vmatprep.subr.mxu0 0.0
    %432 = vmatpush1.msra.mxu0 %v390
    %433 = vmatprep.subr.mxu0 0.0
    %434 = vmatpush1.msra.mxu0 %v389
    %435 = vmatprep.subr.mxu0 0.0
    %436 = vmatpush1.msra.mxu0 %v388
    %437 = vmatprep.subr.mxu0 0.0
    %438 = vmatpush1.msra.mxu0 %v387
    %439 = vmatprep.subr.mxu0 0.0
    %440 = vmatpush1.msra.mxu0 %v386
    %441 = vmatprep.subr.mxu0 0.0
    %442 = vmatpush2.msra.mxu0 0.0
    %443 = vmatprep.subr.mxu0 0.0
    %444 = vmatpush2.msra.mxu0 0.0
    %445 = vmatprep.subr.mxu0 0.0
    %446 = vmatpush2.msra.mxu0 0.0
    %447 = vmatprep.subr.mxu0 0.0
    %448 = vmatpush2.msra.mxu0 0.0
    %449 = vmatprep.subr.mxu0 0.0
    %450 = vmatpush2.msra.mxu0 0.0
    %451 = vmatprep.subr.mxu0 0.0
    %452 = vmatpush2.msra.mxu0 0.0
    %453 = vmatprep.subr.mxu0 0.0
    %454 = vmatpush2.msra.mxu0 0.0
    %455 = vmatprep.subr.mxu0 0.0
    %456 = vmatpush2.msra.mxu0 0.0
    %457 = vmatprep.subr.mxu0 0.0
    %458 = vmatpush2.msra.mxu0 0.0
    %459 = vmatprep.subr.mxu0 0.0
    %460 = vmatpush2.msra.mxu0 0.0
    %461 = vmatprep.subr.mxu0 0.0
    %462 = vmatpush2.msra.mxu0 0.0
    %463 = vmatprep.subr.mxu0 0.0
    %464 = vmatpush2.msra.mxu0 0.0
    %465 = vmatprep.subr.mxu0 0.0
    %466 = vmatpush2.msra.mxu0 0.0
    %467 = vmatprep.subr.mxu0 0.0
    %468 = vmatpush2.msra.mxu0 0.0
    %469 = vmatprep.subr.mxu0 0.0
    %470 = vmatpush2.msra.mxu0 0.0
    %471 = vmatprep.subr.mxu0 0.0
    %472 = vmatpush2.msra.mxu0 0.0
    %473 = vmatprep.mubr.f32.mxu0 0.0
    %474 = vmatmul.mubr.f32.gmra.mxu0 %v385
    %v475 = vpop.f32.mrf.mxu0
    %v476 = vadd.f32 %v407, %v475
    %v477 = vpop.f32.mrf.mxu0
    %478 = vdwg.mxu0
    %479 = vmax.xlane.f32.xlu0 %v476
    %v480 = vpop.xlane.xlu0 %479
    %v481 = vsub.f32 %v476, %v480
    %v482 = vmul.f32 %v481, 1.442695
    %v483 = vpow.pop %v482
    %484 = vadd.xlane.f32.xlu0 %v483
    %v485 = vpop.xlane.xlu0 %484
    %v486 = vlog2.pop %v485
    %v487 = vmul.f32 %v486, 0.6931472
    %v488 = vsub.f32 %v481, %v487
    %489 = vst [vmem:[#allocation13] sm:$0xff] %v488
    // Predicated region
    $region62: #{fwd.1} parent=1 // pred_check
      _
    $region63: #{fwd.1} parent=1 // pred_check_branch
      %491 = sbr.rel (0) target = $region65
    $region64: #{fwd.1} parent=1 // pred_region
      %s493 = ssub.s32 128, 128
      %494 = vsyncadd [#allocation4], %s493
      %s496 = sshll.u32 [#allocation13], 4
      %s497 = int_to_ptr.vmem [resolvable:$true] %s496
      %499 = dma.vmem_to_hbm [thread:$0]  %s497, 128, %s9, [#allocation4]
    $region65: #{fwd.1} parent=1 // pred_fallthru
      _
    // Predicated region
    $region66: #{fwd.1} parent=1 // pred_check
      _
    $region67: #{fwd.1} parent=1 // pred_check_branch
      %501 = sbr.rel (0) target = $region69
    $region68: #{fwd.1} parent=1 // pred_region
      %502 = dma.done [#allocation4], 128
    $region69: #{fwd.1} parent=1 // pred_fallthru
      _
    %503 = vsyncpa [#allocation3], 1
    %504 = vsyncpa [#allocation6], 1
    %505 = vsyncpa [#allocation9], 1
    %506 = vsyncpa [#allocation12], 1
    %507 = vsyncpa [#allocation4], 1

</llo_original>
